<compile_context>
chip_gen: v5e
topology: v5e:2x2
jax: 0.10.0
libtpu: 0.0.40
codegen_flags: <defaults>
</compile_context>

<pallas_src>
import functools
import math

import jax
import jax.numpy as jnp
from jax import lax
from jax.experimental import pallas as pl
from jax.experimental.pallas import tpu as pltpu

SMOOTH = 1e-5
_N_PARTIAL_ACCS = 4  # round-robin partial accumulators (breaks the add chain)


def _cdiv(a, b):
    return -(-a // b)


@functools.lru_cache(maxsize=1)
def _vmem_budgets():
    """(input_budget_bytes, vmem_limit_bytes), gated on chip generation."""
    try:
        cap = getattr(pltpu.get_tpu_info(), "vmem_capacity_bytes", None)
    except Exception:  # defensive: fall back to values safe on every chip
        cap = None
    if cap is not None and cap >= 96 * 1024 * 1024:
        # v5e / v6e: 128 MiB physical VMEM -> big tiles, few grid steps.
        return 48 * 1024 * 1024, 80 * 1024 * 1024
    # v7x (64 MiB per TensorCore) or unknown chip: stay conservative.
    return 20 * 1024 * 1024, 32 * 1024 * 1024


def _choose_fold(n, d):
    """Fold factor r: reshape [N, D] -> [N*r, D/r] so rows fill 8 sublanes.

    Only fold when it is free (D divisible, folded D stays lane-aligned) and
    worthwhile (D reasonably large, N not already a sublane multiple).
    """
    if d < 1024 or n % 8 == 0:
        return 1
    r = 8 // math.gcd(n, 8)  # minimal r making n*r a multiple of 8
    if r > 1 and d % r == 0 and (d // r) % 128 == 0:
        return r
    return 1


def _wsd_kernel(p_ref, t_ref, w_ref, inter_ref, denom_ref, *,
                d, tk, kp, n_tiles, acc_w):
    g = pl.program_id(0)
    k = pl.program_id(1)
    t_idx = g * kp + k          # logical feature-tile index
    last = n_tiles - 1
    n_ch = tk // acc_w
    n_parts = min(_N_PARTIAL_ACCS, n_ch)

    @pl.when(k == 0)
    def _init():
        inter_ref[...] = jnp.zeros_like(inter_ref)
        denom_ref[...] = jnp.zeros_like(denom_ref)

    def _tree_sum(parts):
        while len(parts) > 1:
            nxt = [parts[i] + parts[i + 1] for i in range(0, len(parts) - 1, 2)]
            if len(parts) % 2:
                nxt.append(parts[-1])
            parts = nxt
        return parts[0]

    def accumulate(masked):
        zero = jnp.zeros(inter_ref.shape[1:], jnp.float32)
        inter_parts = [zero] * n_parts
        denom_parts = [zero] * n_parts
        for j in range(n_ch):
            lo, hi = j * acc_w, (j + 1) * acc_w
            if masked:
                # Only the last (ragged) tile runs this branch -> static base.
                base = last * tk + lo
                if base >= d:            # chunk entirely past the end: skip
                    continue
            # Load one 128-lane slice straight from the refs; upcast per chunk.
            p = p_ref[:, lo:hi].astype(jnp.float32)
            t = t_ref[:, lo:hi].astype(jnp.float32)
            w = w_ref[:, lo:hi].astype(jnp.float32)
            if masked and last * tk + hi > d:   # chunk straddles the boundary
                col = base + lax.broadcasted_iota(jnp.int32, p.shape, 1)
                valid = col < d
                zf = jnp.zeros_like(p)
                p = jnp.where(valid, p, zf)
                t = jnp.where(valid, t, zf)
                w = jnp.where(valid, w, zf)
            w2 = w * w
            wp = w2 * p
            a = j % n_parts
            inter_parts[a] = inter_parts[a] + wp * t            # w^2 * p * t
            denom_parts[a] = denom_parts[a] + (wp + w2 * t)     # w^2*(p + t)
        inter_ref[0] += _tree_sum(inter_parts)
        denom_ref[0] += _tree_sum(denom_parts)

    if d % tk == 0:
        accumulate(masked=False)       # every tile is full: zero mask cost
    else:
        @pl.when(t_idx != last)
        def _full_tile():
            accumulate(masked=False)

        @pl.when(t_idx == last)
        def _ragged_tile():
            accumulate(masked=True)


@functools.partial(jax.jit, static_argnames=("tk_max",))
def weighted_soft_dice_loss(probs, targets, weights, *, tk_max=32768):
    """probs/targets/weights: [N, ...] with matching trailing shapes."""
    n = probs.shape[0]
    d_total = 1
    for s in probs.shape[1:]:
        d_total *= s

    # Optionally fold part of D into the row axis (free, contiguous reshape)
    # so small batches fill the 8-sublane tile and each grid step moves more.
    r = _choose_fold(n, d_total)
    rows = n * r
    d = d_total // r
    p2 = probs.reshape(rows, d)
    t2 = targets.reshape(rows, d)
    w2 = weights.reshape(rows, d)

    input_budget, vmem_limit = _vmem_budgets()
    rows_pad = ((rows + 7) // 8) * 8
    itemsize = max(jnp.dtype(a.dtype).itemsize for a in (p2, t2, w2))

    def buf_bytes(width):  # 3 inputs x double pipeline buffers
        return 3 * 2 * rows_pad * width * itemsize

    # ---- tile-size selection: big, lane-aligned, VMEM-budgeted ----
    if d <= 128:
        tk = d                                  # one exact full-row block
    else:
        tk = min(tk_max, (d // 128) * 128)      # largest lane-aligned width
        while tk > 128 and buf_bytes(tk) > input_budget:
            tk = max(128, (tk // 2) // 128 * 128)

    acc_w = 128 if tk % 128 == 0 else tk
    n_tiles = _cdiv(d, tk)
    # Split the reduction over 2 chunks (one per v7x TensorCore) only when it
    # divides evenly -> no redundant clamped tile / duplicate DMA.
    g_chunks = 2 if (n_tiles >= 2 and n_tiles % 2 == 0) else 1
    kp = n_tiles // g_chunks

    in_spec = pl.BlockSpec((rows, tk), lambda gi, ki: (0, gi * kp + ki))
    out_spec = pl.BlockSpec((1, rows, acc_w), lambda gi, ki: (gi, 0, 0))

    kernel = functools.partial(
        _wsd_kernel, d=d, tk=tk, kp=kp, n_tiles=n_tiles, acc_w=acc_w)

    cost = pl.CostEstimate(
        flops=7 * rows * d,
        transcendentals=0,
        bytes_accessed=3 * rows * d * itemsize + 2 * g_chunks * rows * acc_w * 4,
    )

    inter_p, denom_p = pl.pallas_call(
        kernel,
        out_shape=[jax.ShapeDtypeStruct((g_chunks, rows, acc_w), jnp.float32)] * 2,
        grid_spec=pltpu.PrefetchScalarGridSpec(
            num_scalar_prefetch=0,
            grid=(g_chunks, kp),
            in_specs=[in_spec, in_spec, in_spec],
            out_specs=[out_spec, out_spec],
        ),
        compiler_params=pltpu.CompilerParams(
            # TODO(synk): on v7x, verify the g axis actually shards across both
            # TensorCores; if a profile shows one idle TC, switch this axis to
            # pltpu.CORE_PARALLEL.
            dimension_semantics=("parallel", "arbitrary"),
            vmem_limit_bytes=vmem_limit,
        ),
        cost_estimate=cost,
    )(p2, t2, w2)

    # Cheap finalize in JAX: cross-lane + cross-chunk + cross-fold reduce,
    # score, negate, mean over the original batch.
    inter = inter_p.reshape(g_chunks, n, r, acc_w).sum(axis=(0, 2, 3))
    denom = denom_p.reshape(g_chunks, n, r, acc_w).sum(axis=(0, 2, 3))
    score = 2.0 * (inter + SMOOTH) / (denom + SMOOTH)
    return -jnp.sum(score) / n


def _reference(probs, targets, weights):
    n = probs.shape[0]
    smooth = 1e-5
    w = weights.reshape(n, -1).astype(jnp.float32)
    w2 = w * w
    m1 = probs.reshape(n, -1).astype(jnp.float32)
    m2 = targets.reshape(n, -1).astype(jnp.float32)
    inter = m1 * m2
    score = 2.0 * ((w2 * inter).sum(1) + smooth) / (
        (w2 * m1).sum(1) + (w2 * m2).sum(1) + smooth
    )
    return -score.sum() / n


if __name__ == "__main__":
    key = jax.random.PRNGKey(0)
    k1, k2, k3 = jax.random.split(key, 3)

    # 1) lane-aligned D (C*H*W = 1024): exercises the row fold (N*r = 8 rows).
    N, C, H, W = 2, 4, 16, 16
    probs = jax.nn.sigmoid(jax.random.normal(k1, (N, C, H, W), jnp.float32))
    targets = (jax.random.uniform(k2, (N, C, H, W)) > 0.5).astype(jnp.float32)
    weights = jax.random.uniform(k3, (N, C, H, W), jnp.float32) + 0.5

    loss = jax.block_until_ready(weighted_soft_dice_loss(probs, targets, weights))
    ref = _reference(probs, targets, weights)
    assert jnp.allclose(loss, ref, rtol=1e-5, atol=1e-6), (loss, ref)

    # 2) ragged D = 300: in-kernel tail masking, reduction split into 2 chunks.
    k4, k5, k6 = jax.random.split(k1, 3)
    C2, H2, W2 = 3, 10, 10
    probs2 = jax.nn.sigmoid(jax.random.normal(k4, (N, C2, H2, W2), jnp.float32))
    targets2 = (jax.random.uniform(k5, (N, C2, H2, W2)) > 0.5).astype(jnp.float32)
    weights2 = jax.random.uniform(k6, (N, C2, H2, W2), jnp.float32) + 0.5

    loss2 = jax.block_until_ready(weighted_soft_dice_loss(probs2, targets2, weights2))
    ref2 = _reference(probs2, targets2, weights2)
    assert jnp.allclose(loss2, ref2, rtol=1e-5, atol=1e-6), (loss2, ref2)

    # 3) same ragged case forced into 3 feature tiles (tk_max=128): exercises
    #    multi-step accumulation into the resident output block.
    loss3 = jax.block_until_ready(
        weighted_soft_dice_loss(probs2, targets2, weights2, tk_max=128))
    assert jnp.allclose(loss3, ref2, rtol=1e-5, atol=1e-6), (loss3, ref2)

    # 4) bf16 inputs (halves HBM traffic); accumulation stays in f32.
    pb = probs.astype(jnp.bfloat16)
    tb = targets.astype(jnp.bfloat16)
    wb = weights.astype(jnp.bfloat16)
    loss4 = jax.block_until_ready(weighted_soft_dice_loss(pb, tb, wb))
    ref4 = _reference(pb, tb, wb)
    assert jnp.allclose(loss4, ref4, rtol=1e-4, atol=1e-5), (loss4, ref4)

    print("KERNEL_OK")
</pallas_src>

<mosaic_0001>
module attributes {stable_mosaic.version = 11 : i64} {
  func.func @_wsd_kernel(%arg0: i32, %arg1: i32, %arg2: memref<8x256xf32, #tpu.memory_space<vmem>>, %arg3: memref<8x256xf32, #tpu.memory_space<vmem>>, %arg4: memref<8x256xf32, #tpu.memory_space<vmem>>, %arg5: memref<1x8x128xf32, #tpu.memory_space<vmem>>, %arg6: memref<1x8x128xf32, #tpu.memory_space<vmem>>) attributes {dimension_semantics = [#tpu.dimension_semantics<parallel>, #tpu.dimension_semantics<arbitrary>], iteration_bounds = array<i64: 1, 1>, scalar_prefetch = 0 : i64, scratch_operands = 0 : i64, tpu.core_type = #tpu.core_type<tc>, window_params = [{transform_indices = @transform_0, window_bounds = array<i64: 8, 256>}, {transform_indices = @transform_1, window_bounds = array<i64: 8, 256>}, {transform_indices = @transform_2, window_bounds = array<i64: 8, 256>}, {transform_indices = @transform_3, window_bounds = array<i64: 1, 8, 128>}, {transform_indices = @transform_4, window_bounds = array<i64: 1, 8, 128>}]} {
    %c0_i32 = arith.constant 0 : i32
    %0 = arith.cmpi eq, %arg1, %c0_i32 : i32
    %1 = arith.extui %0 : i1 to i32
    %c0_i32_0 = arith.constant 0 : i32
    %2 = arith.cmpi ne, %1, %c0_i32_0 : i32
    scf.if %2 {
      %cst_23 = arith.constant 0.000000e+00 : f32
      %38 = vector.broadcast %cst_23 : f32 to vector<1x8x128xf32>
      %c0_24 = arith.constant 0 : index
      %c0_25 = arith.constant 0 : index
      %c0_26 = arith.constant 0 : index
      %39 = vector.load %arg5[%c0_24, %c0_25, %c0_26] : memref<1x8x128xf32, #tpu.memory_space<vmem>>, vector<1x8x128xf32>
      tpu.vector_store %arg5[%c0_24, %c0_25, %c0_26], %38 {strides = array<i32>} : memref<1x8x128xf32, #tpu.memory_space<vmem>>, vector<1x8x128xf32>,
      %cst_27 = arith.constant 0.000000e+00 : f32
      %40 = vector.broadcast %cst_27 : f32 to vector<1x8x128xf32>
      %c0_28 = arith.constant 0 : index
      %c0_29 = arith.constant 0 : index
      %c0_30 = arith.constant 0 : index
      %41 = vector.load %arg6[%c0_28, %c0_29, %c0_30] : memref<1x8x128xf32, #tpu.memory_space<vmem>>, vector<1x8x128xf32>
      tpu.vector_store %arg6[%c0_28, %c0_29, %c0_30], %40 {strides = array<i32>} : memref<1x8x128xf32, #tpu.memory_space<vmem>>, vector<1x8x128xf32>,
    } else {
    }
    %cst = arith.constant 0.000000e+00 : f32
    %3 = vector.broadcast %cst : f32 to vector<8x128xf32>
    %c0 = arith.constant 0 : index
    %c0_1 = arith.constant 0 : index
    %4 = vector.load %arg2[%c0, %c0_1] : memref<8x256xf32, #tpu.memory_space<vmem>>, vector<8x128xf32>
    %c0_2 = arith.constant 0 : index
    %c0_3 = arith.constant 0 : index
    %5 = vector.load %arg3[%c0_2, %c0_3] : memref<8x256xf32, #tpu.memory_space<vmem>>, vector<8x128xf32>
    %c0_4 = arith.constant 0 : index
    %c0_5 = arith.constant 0 : index
    %6 = vector.load %arg4[%c0_4, %c0_5] : memref<8x256xf32, #tpu.memory_space<vmem>>, vector<8x128xf32>
    %7 = arith.mulf %6, %6 : vector<8x128xf32>
    %8 = arith.mulf %7, %4 : vector<8x128xf32>
    %9 = arith.mulf %8, %5 : vector<8x128xf32>
    %10 = arith.addf %3, %9 : vector<8x128xf32>
    %11 = arith.mulf %7, %5 : vector<8x128xf32>
    %12 = arith.addf %8, %11 : vector<8x128xf32>
    %13 = arith.addf %3, %12 : vector<8x128xf32>
    %c0_6 = arith.constant 0 : index
    %c128 = arith.constant 128 : index
    %14 = vector.load %arg2[%c0_6, %c128] : memref<8x256xf32, #tpu.memory_space<vmem>>, vector<8x128xf32>
    %c0_7 = arith.constant 0 : index
    %c128_8 = arith.constant 128 : index
    %15 = vector.load %arg3[%c0_7, %c128_8] : memref<8x256xf32, #tpu.memory_space<vmem>>, vector<8x128xf32>
    %c0_9 = arith.constant 0 : index
    %c128_10 = arith.constant 128 : index
    %16 = vector.load %arg4[%c0_9, %c128_10] : memref<8x256xf32, #tpu.memory_space<vmem>>, vector<8x128xf32>
    %17 = arith.mulf %16, %16 : vector<8x128xf32>
    %18 = arith.mulf %17, %14 : vector<8x128xf32>
    %19 = arith.mulf %18, %15 : vector<8x128xf32>
    %20 = arith.addf %3, %19 : vector<8x128xf32>
    %21 = arith.mulf %17, %15 : vector<8x128xf32>
    %22 = arith.addf %18, %21 : vector<8x128xf32>
    %23 = arith.addf %3, %22 : vector<8x128xf32>
    %c0_11 = arith.constant 0 : index
    %c0_12 = arith.constant 0 : index
    %c0_13 = arith.constant 0 : index
    %24 = vector.load %arg5[%c0_11, %c0_12, %c0_13] : memref<1x8x128xf32, #tpu.memory_space<vmem>>, vector<1x8x128xf32>
    %25 = vector.shape_cast %24 : vector<1x8x128xf32> to vector<8x128xf32>
    %26 = arith.addf %10, %20 : vector<8x128xf32>
    %27 = arith.addf %25, %26 : vector<8x128xf32>
    %c0_14 = arith.constant 0 : index
    %c0_15 = arith.constant 0 : index
    %c0_16 = arith.constant 0 : index
    %28 = vector.load %arg5[%c0_14, %c0_15, %c0_16] : memref<1x8x128xf32, #tpu.memory_space<vmem>>, vector<1x8x128xf32>
    %29 = vector.shape_cast %28 : vector<1x8x128xf32> to vector<8x128xf32>
    %30 = vector.shape_cast %27 : vector<8x128xf32> to vector<1x8x128xf32>
    tpu.vector_store %arg5[%c0_14, %c0_15, %c0_16], %30 {strides = array<i32>} : memref<1x8x128xf32, #tpu.memory_space<vmem>>, vector<1x8x128xf32>,
    %c0_17 = arith.constant 0 : index
    %c0_18 = arith.constant 0 : index
    %c0_19 = arith.constant 0 : index
    %31 = vector.load %arg6[%c0_17, %c0_18, %c0_19] : memref<1x8x128xf32, #tpu.memory_space<vmem>>, vector<1x8x128xf32>
    %32 = vector.shape_cast %31 : vector<1x8x128xf32> to vector<8x128xf32>
    %33 = arith.addf %13, %23 : vector<8x128xf32>
    %34 = arith.addf %32, %33 : vector<8x128xf32>
    %c0_20 = arith.constant 0 : index
    %c0_21 = arith.constant 0 : index
    %c0_22 = arith.constant 0 : index
    %35 = vector.load %arg6[%c0_20, %c0_21, %c0_22] : memref<1x8x128xf32, #tpu.memory_space<vmem>>, vector<1x8x128xf32>
    %36 = vector.shape_cast %35 : vector<1x8x128xf32> to vector<8x128xf32>
    %37 = vector.shape_cast %34 : vector<8x128xf32> to vector<1x8x128xf32>
    tpu.vector_store %arg6[%c0_20, %c0_21, %c0_22], %37 {strides = array<i32>} : memref<1x8x128xf32, #tpu.memory_space<vmem>>, vector<1x8x128xf32>,
    return
  }
  func.func @transform_0(%arg0: i32, %arg1: i32) -> (i32, i32) {
    %c1_i32 = arith.constant 1 : i32
    %0 = arith.muli %arg0, %c1_i32 : i32
    %1 = arith.addi %0, %arg1 : i32
    %c0_i32 = arith.constant 0 : i32
    %c0_i32_0 = arith.constant 0 : i32
    return %c0_i32, %1 : i32, i32
  }
  func.func @transform_1(%arg0: i32, %arg1: i32) -> (i32, i32) {
    %c1_i32 = arith.constant 1 : i32
    %0 = arith.muli %arg0, %c1_i32 : i32
    %1 = arith.addi %0, %arg1 : i32
    %c0_i32 = arith.constant 0 : i32
    %c0_i32_0 = arith.constant 0 : i32
    return %c0_i32, %1 : i32, i32
  }
  func.func @transform_2(%arg0: i32, %arg1: i32) -> (i32, i32) {
    %c1_i32 = arith.constant 1 : i32
    %0 = arith.muli %arg0, %c1_i32 : i32
    %1 = arith.addi %0, %arg1 : i32
    %c0_i32 = arith.constant 0 : i32
    %c0_i32_0 = arith.constant 0 : i32
    return %c0_i32, %1 : i32, i32
  }
  func.func @transform_3(%arg0: i32, %arg1: i32) -> (i32, i32, i32) {
    %c0_i32 = arith.constant 0 : i32
    %c0_i32_0 = arith.constant 0 : i32
    %c0_i32_1 = arith.constant 0 : i32
    return %arg0, %c0_i32, %c0_i32_0 : i32, i32, i32
  }
  func.func @transform_4(%arg0: i32, %arg1: i32) -> (i32, i32, i32) {
    %c0_i32 = arith.constant 0 : i32
    %c0_i32_0 = arith.constant 0 : i32
    %c0_i32_1 = arith.constant 0 : i32
    return %arg0, %c0_i32, %c0_i32_0 : i32, i32, i32
  }
}

</mosaic_0001>

<llo_original>
// kernel: weighted_soft_dice_loss.1
$region0: #{weighted_soft_dice_loss.1}
  #allocation0 [shape = 'u32[]', space=smem, size = 0x4, offset = 0x4, fixed_abs, tag = 'smem constant byte address 0x4 - core index']
  #allocation1 [shape = 'u32[72,128]{1,0:T(1,128)}', space=vmem, size = 0x9000, scoped, tag = 'internal scratch']
  %s0 = inlined_call_operand.vmem [shape: f32[8,256], index: 0, kind: input, shape index: {}]
  %s1 = inlined_call_operand.vmem [shape: f32[8,256], index: 1, kind: input, shape index: {}]
  %s2 = inlined_call_operand.vmem [shape: f32[8,256], index: 2, kind: input, shape index: {}]
  %s3 = inlined_call_operand.vmem [shape: f32[1,8,128], index: 3, kind: output, shape index: {0}]
  %s4 = inlined_call_operand.vmem [shape: f32[1,8,128], index: 4, kind: output, shape index: {1}]
  %5 = xla_tuple %s3, %s4
  %s6 = sld [smem:[#allocation0]]
  $region34: #{weighted_soft_dice_loss.1} parent=0
    _
  %s8 = ssub.s32 1, %s6
  %s9 = scalar_select 0, %s8, %s6
  // Predicated region
  $region2: #{weighted_soft_dice_loss.1} parent=0 // pred_check
    _
  $region3: #{weighted_soft_dice_loss.1} parent=0 // pred_check_branch
    %11 = sbr.rel (0) target = $region5
  $region4: #{weighted_soft_dice_loss.1} parent=0 // pred_region
    %s12 = sadd.s32 0, 0
    %s13 = smul.u32 2, %s12
    %p14 = scmp.lt.s32.totalorder %s13, 1
    %s15 = scalar_select %p14, %s13, 1
    %s16 = smul.addr %s15, 8
    %s17 = scalar_lea.vmem %s0, %s16
    %s18 = sadd.s32 0, 0
    %s19 = smul.u32 2, %s18
  $region5: #{weighted_soft_dice_loss.1} parent=0 // pred_fallthru
    _
  // Predicated region
  $region6: #{weighted_soft_dice_loss.1} parent=0 // pred_check
    _
  $region7: #{weighted_soft_dice_loss.1} parent=0 // pred_check_branch
    %21 = sbr.rel (0) target = $region9
  $region8: #{weighted_soft_dice_loss.1} parent=0 // pred_region
    %s22 = sadd.s32 0, 0
    %s23 = smul.u32 2, %s22
    %p24 = scmp.lt.s32.totalorder %s23, 1
    %s25 = scalar_select %p24, %s23, 1
    %s26 = smul.addr %s25, 8
    %s27 = scalar_lea.vmem %s1, %s26
    %s28 = sadd.s32 0, 0
    %s29 = smul.u32 2, %s28
  $region9: #{weighted_soft_dice_loss.1} parent=0 // pred_fallthru
    _
  // Predicated region
  $region10: #{weighted_soft_dice_loss.1} parent=0 // pred_check
    _
  $region11: #{weighted_soft_dice_loss.1} parent=0 // pred_check_branch
    %31 = sbr.rel (0) target = $region13
  $region12: #{weighted_soft_dice_loss.1} parent=0 // pred_region
    %s32 = sadd.s32 0, 0
    %s33 = smul.u32 2, %s32
    %p34 = scmp.lt.s32.totalorder %s33, 1
    %s35 = scalar_select %p34, %s33, 1
    %s36 = smul.addr %s35, 8
    %s37 = scalar_lea.vmem %s2, %s36
    %s38 = sadd.s32 0, 0
    %s39 = smul.u32 2, %s38
  $region13: #{weighted_soft_dice_loss.1} parent=0 // pred_fallthru
    _
  %s40 = sadd.s32 0, 0
  %s41 = smul.u32 2, %s40
  %p42 = scmp.lt.s32.totalorder %s41, 1
  %s43 = scalar_select %p42, %s41, 1
  %s44 = smul.addr %s43, 8
  %s45 = scalar_lea.vmem %s0, %s44
  %s46 = sadd.s32 0, 0
  %s47 = smul.u32 2, %s46
  %p48 = scmp.lt.s32.totalorder %s47, 1
  %s49 = scalar_select %p48, %s47, 1
  %s50 = smul.addr %s49, 8
  %s51 = scalar_lea.vmem %s1, %s50
  %s52 = sadd.s32 0, 0
  %s53 = smul.u32 2, %s52
  %p54 = scmp.lt.s32.totalorder %s53, 1
  %s55 = scalar_select %p54, %s53, 1
  %s56 = smul.addr %s55, 8
  %s57 = scalar_lea.vmem %s2, %s56
  %s58 = sadd.s32 0, 0
  %s59 = smul.u32 2, %s58
  %p60 = scmp.lt.s32.totalorder %s59, 1
  %s61 = scalar_select %p60, %s59, 1
  %s62 = smul.addr %s61, 8
  %s63 = scalar_lea.vmem %s0, %s62
  %s64 = sadd.s32 0, 0
  %s65 = smul.u32 2, %s64
  %s66 = sadd.s32 0, 0
  %s67 = smul.u32 2, %s66
  %p68 = scmp.lt.s32.totalorder %s67, 1
  %s69 = scalar_select %p68, %s67, 1
  %s70 = smul.addr %s69, 8
  %s71 = scalar_lea.vmem %s1, %s70
  %s72 = sadd.s32 0, 0
  %s73 = smul.u32 2, %s72
  %s74 = sadd.s32 0, 0
  %s75 = smul.u32 2, %s74
  %p76 = scmp.lt.s32.totalorder %s75, 1
  %s77 = scalar_select %p76, %s75, 1
  %s78 = smul.addr %s77, 8
  %s79 = scalar_lea.vmem %s2, %s78
  %s80 = sadd.s32 0, 0
  %s81 = smul.u32 2, %s80
  %p82 = scmp.eq.s32.totalorder 0, 0
  // Predicated region
  $region14: #{weighted_soft_dice_loss.1} parent=0 // pred_check
    %p83 = pneg %p82
  $region15: #{weighted_soft_dice_loss.1} parent=0 // pred_check_branch
    %85 = sbr.rel (%p83) target = $region17
  $region16: #{weighted_soft_dice_loss.1} parent=0 // pred_region
    %86 = vst [vmem:[%s3] sm:$0xff] 0.0
    %87 = vst [vmem:[%s4] sm:$0xff] 0.0
  $region17: #{weighted_soft_dice_loss.1} parent=0 // pred_fallthru
    _
  %v88 = vld [vmem:[%s63] sm:$0xff]
  %v89 = vld [vmem:[%s71] sm:$0xff]
  %v90 = vld [vmem:[%s79] sm:$0xff]
  %v91 = vmul.f32 %v90, %v90
  %v92 = vmul.f32 %v91, %v88
  %v93 = vmul.f32 %v92, %v89
  %v94 = vadd.f32 %v93, 0.0
  %v95 = vmul.f32 %v91, %v89
  %v96 = vadd.f32 %v92, %v95
  %v97 = vadd.f32 %v96, 0.0
  %v98 = vld [vmem:[%s63 + $0x8] sm:$0xff]
  %v99 = vld [vmem:[%s71 + $0x8] sm:$0xff]
  %v100 = vld [vmem:[%s79 + $0x8] sm:$0xff]
  %v101 = vmul.f32 %v100, %v100
  %v102 = vmul.f32 %v101, %v98
  %v103 = vmul.f32 %v102, %v99
  %v104 = vadd.f32 %v103, 0.0
  %v105 = vmul.f32 %v101, %v99
  %v106 = vadd.f32 %v102, %v105
  %v107 = vadd.f32 %v106, 0.0
  %v108 = vld [vmem:[%s3] sm:$0xff]
  %v109 = vadd.f32 %v94, %v104
  %v110 = vadd.f32 %v108, %v109
  %111 = vst [vmem:[%s3] sm:$0xff] %v110
  %v112 = vld [vmem:[%s4] sm:$0xff]
  %v113 = vadd.f32 %v97, %v107
  %v114 = vadd.f32 %v112, %v113
  %115 = vst [vmem:[%s4] sm:$0xff] %v114
  // Predicated region
  $region18: #{weighted_soft_dice_loss.1} parent=0 // pred_check
    _
  $region19: #{weighted_soft_dice_loss.1} parent=0 // pred_check_branch
    %117 = sbr.rel (0) target = $region21
  $region20: #{weighted_soft_dice_loss.1} parent=0 // pred_region
    _
  $region21: #{weighted_soft_dice_loss.1} parent=0 // pred_fallthru
    _
  // Predicated region
  $region22: #{weighted_soft_dice_loss.1} parent=0 // pred_check
    _
  $region23: #{weighted_soft_dice_loss.1} parent=0 // pred_check_branch
    %119 = sbr.rel (0) target = $region25
  $region24: #{weighted_soft_dice_loss.1} parent=0 // pred_region
    _
  $region25: #{weighted_soft_dice_loss.1} parent=0 // pred_fallthru
    _
  // Predicated region
  $region26: #{weighted_soft_dice_loss.1} parent=0 // pred_check
    _
  $region27: #{weighted_soft_dice_loss.1} parent=0 // pred_check_branch
    %121 = sbr.rel (0) target = $region29
  $region28: #{weighted_soft_dice_loss.1} parent=0 // pred_region
    _
  $region29: #{weighted_soft_dice_loss.1} parent=0 // pred_fallthru
    _
  // Predicated region
  $region30: #{weighted_soft_dice_loss.1} parent=0 // pred_check
    _
  $region31: #{weighted_soft_dice_loss.1} parent=0 // pred_check_branch
    %123 = sbr.rel (0) target = $region33
  $region32: #{weighted_soft_dice_loss.1} parent=0 // pred_region
    _
  $region33: #{weighted_soft_dice_loss.1} parent=0 // pred_fallthru
    _

</llo_original>
